<compile_context>
chip_gen: v7x
topology: tpu7x:2x2x1
jax: 0.10.0
libtpu: 0.0.40
codegen_flags: <defaults>
</compile_context>

<pallas_src>
import functools

import jax
import jax.numpy as jnp
from jax.experimental import pallas as pl
from jax.experimental.pallas import tpu as pltpu

# Pendulum-v0 spaces
NUM_INPUTS = 3      # observation_space.shape[0]
NUM_OUTPUTS = 1     # action_space.shape[0]
HIDDEN = 32
LEAKY_SLOPE = 0.01  # torch.nn.LeakyReLU default negative_slope

LANE = 128          # TPU lane width: output slab is lane-dense
VALUE_COL = 0       # output-slab column holding the critic value
MU_COL = 1          # output-slab columns [1, 1+NUM_OUTPUTS) hold mu


def _round_up(x, m):
    return ((x + m - 1) // m) * m


def _leaky_relu(x):
    return jnp.where(x > 0, x, LEAKY_SLOPE * x)


def actor_critic_kernel(x_ref, w1_ref, b1_ref, w2_ref, b2_ref, out_ref):
    """Fused actor+critic forward for one batch tile.

    Layer 1 (actor||critic fused, K = NUM_INPUTS = 3): rank-1 VPU FMAs — an
    MXU pass at K=3 wastes the systolic array and pays result-FIFO latency.
    Layer 2: one block-diagonal MXU matmul producing a lane-dense (TB, 128)
    slab (col 0 = value, col 1 = mu, remaining cols zero) -> unmasked store.
    """
    x = x_ref[...]                      # (TB, NUM_INPUTS) f32
    w1 = w1_ref[...]                    # (NUM_INPUTS, 2*HIDDEN)

    # ---- fused first layer: hidden = leaky_relu(x @ W1 + b1) via 3 FMAs ----
    hidden = b1_ref[...]                # (1, 2*HIDDEN) broadcasts over rows
    for k in range(NUM_INPUTS):         # static trip count, unrolled at trace
        hidden = hidden + x[:, k:k + 1] * w1[k:k + 1, :]
    hidden = _leaky_relu(hidden)        # (TB, 2*HIDDEN)

    # ---- fused second layer (block-diagonal) on the MXU ----
    y = jnp.dot(hidden, w2_ref[...], preferred_element_type=jnp.float32)
    out_ref[...] = y + b2_ref[...]      # single lane-dense (TB, 128) store


def pack_params(params):
    """Fuse PyTorch-layout parameters into the packed kernel layout (call once).

    Returns (W1, b1, W2, b2, log_std):
      W1: (NUM_INPUTS, 2*HIDDEN) = [wc1 | wa1]
      b1: (1, 2*HIDDEN)          = [bc1 | ba1]
      W2: (2*HIDDEN, LANE)  block-diagonal: col VALUE_COL <- critic head,
                            cols MU_COL.. <- actor head, rest zero
      b2: (1, LANE)
    """
    wc1, bc1, wc2, bc2, wa1, ba1, wa2, ba2, log_std = params
    W1 = jnp.concatenate([wc1, wa1], axis=1).astype(jnp.float32)
    b1 = jnp.concatenate([bc1, ba1], axis=1).astype(jnp.float32)
    W2 = jnp.zeros((2 * HIDDEN, LANE), jnp.float32)
    W2 = W2.at[:HIDDEN, VALUE_COL:VALUE_COL + 1].set(wc2)
    W2 = W2.at[HIDDEN:, MU_COL:MU_COL + NUM_OUTPUTS].set(wa2)
    b2 = jnp.zeros((1, LANE), jnp.float32)
    b2 = b2.at[:, VALUE_COL:VALUE_COL + 1].set(bc2)
    b2 = b2.at[:, MU_COL:MU_COL + NUM_OUTPUTS].set(ba2)
    return W1, b1, W2, b2, log_std


@functools.partial(jax.jit, static_argnames=("max_batch_tile",))
def actor_critic_forward(x, packed, *, max_batch_tile=512):
    """Run the fused ActorCritic forward pass.

    Returns (mu, std, value) — the parameters of Normal(mu, std) and the value.
    """
    W1, b1, W2, b2, log_std = packed
    B = x.shape[0]

    # Batch tiling: largest 8-aligned tile up to max_batch_tile; pad B to a
    # multiple of the tile (padded rows are computed but sliced off below).
    TB = min(max_batch_tile, _round_up(B, 8))
    B_pad = _round_up(B, TB)
    if B_pad != B:
        x = jnp.pad(x, ((0, B_pad - B), (0, 0)))

    out = pl.pallas_call(
        actor_critic_kernel,
        out_shape=jax.ShapeDtypeStruct((B_pad, LANE), jnp.float32),
        grid=(B_pad // TB,),
        in_specs=[
            pl.BlockSpec((TB, NUM_INPUTS), lambda i: (i, 0)),          # x tile
            pl.BlockSpec((NUM_INPUTS, 2 * HIDDEN), lambda i: (0, 0)),  # W1 (resident)
            pl.BlockSpec((1, 2 * HIDDEN), lambda i: (0, 0)),           # b1
            pl.BlockSpec((2 * HIDDEN, LANE), lambda i: (0, 0)),        # W2
            pl.BlockSpec((1, LANE), lambda i: (0, 0)),                 # b2
        ],
        out_specs=pl.BlockSpec((TB, LANE), lambda i: (i, 0)),
        compiler_params=pltpu.CompilerParams(
            dimension_semantics=("parallel",)),  # shard batch tiles across TCs
    )(x, W1, b1, W2, b2)

    value = out[:B, VALUE_COL:VALUE_COL + 1]
    mu = out[:B, MU_COL:MU_COL + NUM_OUTPUTS]
    # std = exp(log_std) is independent of x -> computed outside the kernel.
    std = jnp.broadcast_to(jnp.exp(log_std), mu.shape)
    return mu, std, value
    # TODO(synk): torch.distributions.Normal object itself has no Pallas
    # equivalent; we return its parameters (mu, std) instead.


def init_params(key, num_inputs=NUM_INPUTS, num_outputs=NUM_OUTPUTS,
                hidden=HIDDEN, std=0.0):
    """Deterministic init mimicking nn.Linear's uniform(-1/sqrt(fan_in), ...)."""
    ks = jax.random.split(key, 8)

    def lin(kw, kb, fan_in, fan_out):
        bound = 1.0 / jnp.sqrt(jnp.float32(fan_in))
        w = jax.random.uniform(kw, (fan_in, fan_out), jnp.float32, -bound, bound)
        b = jax.random.uniform(kb, (1, fan_out), jnp.float32, -bound, bound)
        return w, b

    wc1, bc1 = lin(ks[0], ks[1], num_inputs, hidden)
    wc2, bc2 = lin(ks[2], ks[3], hidden, 1)
    wa1, ba1 = lin(ks[4], ks[5], num_inputs, hidden)
    wa2, ba2 = lin(ks[6], ks[7], hidden, num_outputs)
    log_std = jnp.ones((1, num_outputs), jnp.float32) * std
    return (wc1, bc1, wc2, bc2, wa1, ba1, wa2, ba2, log_std)


def reference_forward(x, params):
    """Pure-JAX reference (matches the PyTorch module)."""
    (wc1, bc1, wc2, bc2, wa1, ba1, wa2, ba2, log_std) = params
    hc = _leaky_relu(x @ wc1 + bc1)
    value = hc @ wc2 + bc2
    ha = _leaky_relu(x @ wa1 + ba1)
    mu = ha @ wa2 + ba2
    std = jnp.broadcast_to(jnp.exp(log_std), mu.shape)
    return mu, std, value


if __name__ == "__main__":
    key = jax.random.PRNGKey(0)
    k_param, k_x = jax.random.split(key)

    params = init_params(k_param)
    packed = pack_params(params)

    # batch of Pendulum observations (multiple-of-8 batch)
    B = 8
    x = jax.random.normal(k_x, (B, NUM_INPUTS), jnp.float32)
    mu, std, value = actor_critic_forward(x, packed)
    jax.block_until_ready((mu, std, value))

    mu_r, std_r, value_r = reference_forward(x, params)
    assert mu.shape == (B, NUM_OUTPUTS)
    assert std.shape == (B, NUM_OUTPUTS)
    assert value.shape == (B, 1)
    assert jnp.allclose(mu, mu_r, atol=1e-5)
    assert jnp.allclose(std, std_r, atol=1e-5)
    assert jnp.allclose(value, value_r, atol=1e-5)

    # also exercise the padded (non-multiple-of-8) batch path
    B2 = 5
    x2 = jax.random.normal(jax.random.PRNGKey(1), (B2, NUM_INPUTS), jnp.float32)
    mu2, std2, value2 = actor_critic_forward(x2, packed)
    jax.block_until_ready((mu2, std2, value2))
    mu2_r, std2_r, value2_r = reference_forward(x2, params)
    assert mu2.shape == (B2, NUM_OUTPUTS)
    assert jnp.allclose(mu2, mu2_r, atol=1e-5)
    assert jnp.allclose(std2, std2_r, atol=1e-5)
    assert jnp.allclose(value2, value2_r, atol=1e-5)

    print("KERNEL_OK")
</pallas_src>

<mosaic_0001>
module attributes {stable_mosaic.version = 11 : i64} {
  func.func @actor_critic_kernel(%arg0: i32, %arg1: memref<8x3xf32, #tpu.memory_space<vmem>>, %arg2: memref<3x64xf32, #tpu.memory_space<vmem>>, %arg3: memref<1x64xf32, #tpu.memory_space<vmem>>, %arg4: memref<64x128xf32, #tpu.memory_space<vmem>>, %arg5: memref<1x128xf32, #tpu.memory_space<vmem>>, %arg6: memref<8x128xf32, #tpu.memory_space<vmem>>) attributes {dimension_semantics = [#tpu.dimension_semantics<parallel>], iteration_bounds = array<i64: 1>, scalar_prefetch = 0 : i64, scratch_operands = 0 : i64, tpu.core_type = #tpu.core_type<tc>, window_params = [{transform_indices = @transform_0, window_bounds = array<i64: 8, 3>}, {pipeline_mode = #tpu.pipeline_mode<synchronous>, transform_indices = @transform_1, window_bounds = array<i64: 3, 64>}, {pipeline_mode = #tpu.pipeline_mode<synchronous>, transform_indices = @transform_2, window_bounds = array<i64: 1, 64>}, {pipeline_mode = #tpu.pipeline_mode<synchronous>, transform_indices = @transform_3, window_bounds = array<i64: 64, 128>}, {pipeline_mode = #tpu.pipeline_mode<synchronous>, transform_indices = @transform_4, window_bounds = array<i64: 1, 128>}, {transform_indices = @transform_5, window_bounds = array<i64: 8, 128>}]} {
    %c0 = arith.constant 0 : index
    %c0_0 = arith.constant 0 : index
    %0 = vector.load %arg1[%c0, %c0_0] : memref<8x3xf32, #tpu.memory_space<vmem>>, vector<8x3xf32>
    %c0_1 = arith.constant 0 : index
    %c0_2 = arith.constant 0 : index
    %1 = vector.load %arg2[%c0_1, %c0_2] : memref<3x64xf32, #tpu.memory_space<vmem>>, vector<3x64xf32>
    %c0_3 = arith.constant 0 : index
    %c0_4 = arith.constant 0 : index
    %2 = vector.load %arg3[%c0_3, %c0_4] : memref<1x64xf32, #tpu.memory_space<vmem>>, vector<1x64xf32>
    %3 = vector.extract_strided_slice %0 {offsets = [0, 0], sizes = [8, 1], strides = [1, 1]} : vector<8x3xf32> to vector<8x1xf32>
    %4 = vector.extract_strided_slice %1 {offsets = [0, 0], sizes = [1, 64], strides = [1, 1]} : vector<3x64xf32> to vector<1x64xf32>
    %5 = vector.broadcast %3 : vector<8x1xf32> to vector<8x64xf32>
    %6 = vector.broadcast %4 : vector<1x64xf32> to vector<8x64xf32>
    %7 = arith.mulf %5, %6 : vector<8x64xf32>
    %8 = vector.broadcast %2 : vector<1x64xf32> to vector<8x64xf32>
    %9 = arith.addf %8, %7 : vector<8x64xf32>
    %10 = vector.extract_strided_slice %0 {offsets = [0, 1], sizes = [8, 1], strides = [1, 1]} : vector<8x3xf32> to vector<8x1xf32>
    %11 = vector.extract_strided_slice %1 {offsets = [1, 0], sizes = [1, 64], strides = [1, 1]} : vector<3x64xf32> to vector<1x64xf32>
    %12 = vector.broadcast %10 : vector<8x1xf32> to vector<8x64xf32>
    %13 = vector.broadcast %11 : vector<1x64xf32> to vector<8x64xf32>
    %14 = arith.mulf %12, %13 : vector<8x64xf32>
    %15 = arith.addf %9, %14 : vector<8x64xf32>
    %16 = vector.extract_strided_slice %0 {offsets = [0, 2], sizes = [8, 1], strides = [1, 1]} : vector<8x3xf32> to vector<8x1xf32>
    %17 = vector.extract_strided_slice %1 {offsets = [2, 0], sizes = [1, 64], strides = [1, 1]} : vector<3x64xf32> to vector<1x64xf32>
    %18 = vector.broadcast %16 : vector<8x1xf32> to vector<8x64xf32>
    %19 = vector.broadcast %17 : vector<1x64xf32> to vector<8x64xf32>
    %20 = arith.mulf %18, %19 : vector<8x64xf32>
    %21 = arith.addf %15, %20 : vector<8x64xf32>
    %cst = arith.constant 0.000000e+00 : f32
    %22 = vector.broadcast %cst : f32 to vector<8x64xf32>
    %23 = arith.cmpf ogt, %21, %22 : vector<8x64xf32>
    %cst_5 = arith.constant 0.00999999977 : f32
    %24 = vector.broadcast %cst_5 : f32 to vector<8x64xf32>
    %25 = arith.mulf %24, %21 : vector<8x64xf32>
    %26 = arith.select %23, %21, %25 : vector<8x64xi1>, vector<8x64xf32>
    %c0_6 = arith.constant 0 : index
    %c0_7 = arith.constant 0 : index
    %27 = vector.load %arg4[%c0_6, %c0_7] : memref<64x128xf32, #tpu.memory_space<vmem>>, vector<64x128xf32>
    %cst_8 = arith.constant dense<0.000000e+00> : vector<8x128xf32>
    %28 = tpu.matmul %26, %27, %cst_8 {dimension_numbers = #tpu.dot_dimension_numbers<[1], [0], [0], [1], [0, 0, 1, 1], [], []>} : vector<8x64xf32>, vector<64x128xf32>, vector<8x128xf32> -> vector<8x128xf32>
    %c0_9 = arith.constant 0 : index
    %c0_10 = arith.constant 0 : index
    %29 = vector.load %arg5[%c0_9, %c0_10] : memref<1x128xf32, #tpu.memory_space<vmem>>, vector<1x128xf32>
    %30 = vector.broadcast %29 : vector<1x128xf32> to vector<8x128xf32>
    %31 = arith.addf %28, %30 : vector<8x128xf32>
    %c0_11 = arith.constant 0 : index
    %c0_12 = arith.constant 0 : index
    %32 = vector.load %arg6[%c0_11, %c0_12] : memref<8x128xf32, #tpu.memory_space<vmem>>, vector<8x128xf32>
    tpu.vector_store %arg6[%c0_11, %c0_12], %31 {strides = array<i32>} : memref<8x128xf32, #tpu.memory_space<vmem>>, vector<8x128xf32>,
    return
  }
  func.func @transform_0(%arg0: i32) -> (i32, i32) {
    %c0_i32 = arith.constant 0 : i32
    %c0_i32_0 = arith.constant 0 : i32
    return %arg0, %c0_i32 : i32, i32
  }
  func.func @transform_1(%arg0: i32) -> (i32, i32) {
    %c0_i32 = arith.constant 0 : i32
    %c0_i32_0 = arith.constant 0 : i32
    %c0_i32_1 = arith.constant 0 : i32
    return %c0_i32, %c0_i32_0 : i32, i32
  }
  func.func @transform_2(%arg0: i32) -> (i32, i32) {
    %c0_i32 = arith.constant 0 : i32
    %c0_i32_0 = arith.constant 0 : i32
    %c0_i32_1 = arith.constant 0 : i32
    return %c0_i32, %c0_i32_0 : i32, i32
  }
  func.func @transform_3(%arg0: i32) -> (i32, i32) {
    %c0_i32 = arith.constant 0 : i32
    %c0_i32_0 = arith.constant 0 : i32
    %c0_i32_1 = arith.constant 0 : i32
    return %c0_i32, %c0_i32_0 : i32, i32
  }
  func.func @transform_4(%arg0: i32) -> (i32, i32) {
    %c0_i32 = arith.constant 0 : i32
    %c0_i32_0 = arith.constant 0 : i32
    %c0_i32_1 = arith.constant 0 : i32
    return %c0_i32, %c0_i32_0 : i32, i32
  }
  func.func @transform_5(%arg0: i32) -> (i32, i32) {
    %c0_i32 = arith.constant 0 : i32
    %c0_i32_0 = arith.constant 0 : i32
    return %arg0, %c0_i32 : i32, i32
  }
}

</mosaic_0001>

<llo_original>
// kernel: actor_critic_forward.1
$region0: #{actor_critic_forward.1}
  #allocation0 [shape = 'u32[]', space=smem, size = 0x4, offset = 0x4, fixed_abs, tag = 'smem constant byte address 0x4 - core index']
  #allocation1 [shape = 'u32[144,128]{1,0:T(1,128)}', space=vmem, size = 0x12000, scoped, tag = 'internal scratch']
  %s0 = inlined_call_operand.vmem [shape: f32[8,3], index: 0, kind: input, shape index: {}]
  %s1 = inlined_call_operand.vmem [shape: f32[3,64], index: 1, kind: input, shape index: {}]
  %s2 = inlined_call_operand.vmem [shape: f32[1,64], index: 2, kind: input, shape index: {}]
  %s3 = inlined_call_operand.hbm [shape: f32[64,128], index: 3, kind: input, shape index: {}]
  %s4 = inlined_call_operand.vmem [shape: f32[1,128], index: 4, kind: input, shape index: {}]
  %s5 = inlined_call_operand.vmem [shape: f32[8,128], index: 5, kind: output, shape index: {}]
  %s6 = sld [smem:[#allocation0]]
  $region34: #{actor_critic_forward.1} parent=0
    _
  %s8 = ssub.s32 1, %s6
  %s9 = scalar_select 0, %s8, %s6
  $region1: #{actor_critic_forward.1} parent=0
    #allocation2 [shape = 'u8[32768]{0}', space=vmem, size = 0x8000, scoped, tag = 'input window, operand 3, single buffered']
    #allocation3 [shape = 's32[1]{0}', space=sflag, size = 0x4, scoped, tag = 'scoped memory for actor_critic_forward.1']
    %10 = vsyncpa [#allocation3], 0
    // Predicated region
    $region2: #{actor_critic_forward.1} parent=1 // pred_check
      _
    $region3: #{actor_critic_forward.1} parent=1 // pred_check_branch
      %12 = sbr.rel (0) target = $region5
    $region4: #{actor_critic_forward.1} parent=1 // pred_region
      _
    $region5: #{actor_critic_forward.1} parent=1 // pred_fallthru
      _
    // Predicated region
    $region6: #{actor_critic_forward.1} parent=1 // pred_check
      _
    $region7: #{actor_critic_forward.1} parent=1 // pred_check_branch
      %14 = sbr.rel (0) target = $region9
    $region8: #{actor_critic_forward.1} parent=1 // pred_region
      _
    $region9: #{actor_critic_forward.1} parent=1 // pred_fallthru
      _
    // Predicated region
    $region10: #{actor_critic_forward.1} parent=1 // pred_check
      _
    $region11: #{actor_critic_forward.1} parent=1 // pred_check_branch
      %16 = sbr.rel (0) target = $region13
    $region12: #{actor_critic_forward.1} parent=1 // pred_region
      _
    $region13: #{actor_critic_forward.1} parent=1 // pred_fallthru
      _
    // Predicated region
    $region14: #{actor_critic_forward.1} parent=1 // pred_check
      _
    $region15: #{actor_critic_forward.1} parent=1 // pred_check_branch
      %18 = sbr.rel (0) target = $region17
    $region16: #{actor_critic_forward.1} parent=1 // pred_region
      %s20 = ssub.s32 1024, 1024
      %21 = vsyncadd [#allocation3], %s20
      %s22 = sshll.u32 [#allocation2], 4
      %s23 = int_to_ptr.vmem [resolvable:$true] %s22
      %28 = dma.hbm_to_vmem [thread:$0]  %s3, 1024, %s23, [#allocation3], 128, 128, 8
    $region17: #{actor_critic_forward.1} parent=1 // pred_fallthru
      _
    // Predicated region
    $region18: #{actor_critic_forward.1} parent=1 // pred_check
      _
    $region19: #{actor_critic_forward.1} parent=1 // pred_check_branch
      %30 = sbr.rel (0) target = $region21
    $region20: #{actor_critic_forward.1} parent=1 // pred_region
      _
    $region21: #{actor_critic_forward.1} parent=1 // pred_fallthru
      _
    // Predicated region
    $region22: #{actor_critic_forward.1} parent=1 // pred_check
      _
    $region23: #{actor_critic_forward.1} parent=1 // pred_check_branch
      %32 = sbr.rel (0) target = $region25
    $region24: #{actor_critic_forward.1} parent=1 // pred_region
      %33 = dma.done [#allocation3], 1024
    $region25: #{actor_critic_forward.1} parent=1 // pred_fallthru
      _
    %v34 = vld [vmem:[%s0] sm:$0xff]
    %v35 = vld [vmem:[%s1] sm:$0x7]
    %v36 = vld [vmem:[%s2] sm:$0x1]
    %38 = vset.pattern.permute.xlu0 0
    %39 = vperm.xlu0 %38, %v34
    %v40 = vpop.permute.xlu0 %39
    %v42 = vlaneseq
    %v43 = vshrl.u32 %v42, 7
    %v44 = vsub.s32 0, %v43
    %v45 = vrot.slane %v35, %v44
    %v46 = vmul.f32 %v40, %v45
    %v48 = vlaneseq
    %v49 = vshrl.u32 %v48, 7
    %v50 = vsub.s32 0, %v49
    %v51 = vrot.slane %v36, %v50
    %v53 = vadd.f32 %v51, %v46
    %54 = vset.pattern.permute.xlu0 1
    %55 = vperm.xlu0 %54, %v34
    %v56 = vpop.permute.xlu0 %55
    %v58 = vlaneseq
    %v59 = vshrl.u32 %v58, 7
    %v60 = vsub.s32 1, %v59
    %v61 = vrot.slane %v35, %v60
    %v62 = vmul.f32 %v56, %v61
    %v63 = vadd.f32 %v53, %v62
    %64 = vset.pattern.permute.xlu0 2
    %65 = vperm.xlu0 %64, %v34
    %v66 = vpop.permute.xlu0 %65
    %v68 = vlaneseq
    %v69 = vshrl.u32 %v68, 7
    %v70 = vsub.s32 2, %v69
    %v71 = vrot.slane %v35, %v70
    %v72 = vmul.f32 %v66, %v71
    %v73 = vadd.f32 %v63, %v72
    %vm74 = vcmp.gt.f32.partialorder %v73, 0.0
    %v75 = vmul.f32 %v73, 0.01
    %v76 = vsel %vm74, %v73, %v75
    %v77 = vld [vmem:[#allocation2] sm:$0xff]
    %v78 = vld [vmem:[#allocation2 + $0x8] sm:$0xff]
    %v79 = vld [vmem:[#allocation2 + $0x10] sm:$0xff]
    %v80 = vld [vmem:[#allocation2 + $0x18] sm:$0xff]
    %v81 = vld [vmem:[#allocation2 + $0x20] sm:$0xff]
    %v82 = vld [vmem:[#allocation2 + $0x28] sm:$0xff]
    %v83 = vld [vmem:[#allocation2 + $0x30] sm:$0xff]
    %v84 = vld [vmem:[#allocation2 + $0x38] sm:$0xff]
    %v85 = vld [vmem:[%s4] sm:$0x1]
    %v87 = vlaneseq
    %v88 = vshrl.u32 %v87, 7
    %v89 = vsub.s32 0, %v88
    %v90 = vrot.slane %v85, %v89
    %vm92 = vcmask 523264
    %v94 = vsel %vm92, %v76, 0
    %96 = vmatprep.subr.mxu0 0.0
    %97 = vmatpush1.msra.mxu0 %v77
    %98 = vmatprep.subr.mxu0 0.0
    %99 = vmatpush1.msra.mxu0 %v78
    %100 = vmatprep.subr.mxu0 0.0
    %101 = vmatpush1.msra.mxu0 %v79
    %102 = vmatprep.subr.mxu0 0.0
    %103 = vmatpush1.msra.mxu0 %v80
    %104 = vmatprep.subr.mxu0 0.0
    %105 = vmatpush1.msra.mxu0 %v81
    %106 = vmatprep.subr.mxu0 0.0
    %107 = vmatpush1.msra.mxu0 %v82
    %108 = vmatprep.subr.mxu0 0.0
    %109 = vmatpush1.msra.mxu0 %v83
    %110 = vmatprep.subr.mxu0 0.0
    %111 = vmatpush1.msra.mxu0 %v84
    %112 = vmatprep.subr.mxu0 0.0
    %113 = vmatpush1.msra.mxu0 0.0
    %114 = vmatprep.subr.mxu0 0.0
    %115 = vmatpush1.msra.mxu0 0.0
    %116 = vmatprep.subr.mxu0 0.0
    %117 = vmatpush1.msra.mxu0 0.0
    %118 = vmatprep.subr.mxu0 0.0
    %119 = vmatpush1.msra.mxu0 0.0
    %120 = vmatprep.subr.mxu0 0.0
    %121 = vmatpush1.msra.mxu0 0.0
    %122 = vmatprep.subr.mxu0 0.0
    %123 = vmatpush1.msra.mxu0 0.0
    %124 = vmatprep.subr.mxu0 0.0
    %125 = vmatpush1.msra.mxu0 0.0
    %126 = vmatprep.subr.mxu0 0.0
    %127 = vmatpush1.msra.mxu0 0.0
    %128 = vmatprep.subr.mxu0 0.0
    %129 = vmatpush1.msra.mxu0 0.0
    %130 = vmatprep.subr.mxu0 0.0
    %131 = vmatpush1.msra.mxu0 0.0
    %132 = vmatprep.subr.mxu0 0.0
    %133 = vmatpush1.msra.mxu0 0.0
    %134 = vmatprep.subr.mxu0 0.0
    %135 = vmatpush1.msra.mxu0 0.0
    %136 = vmatprep.subr.mxu0 0.0
    %137 = vmatpush1.msra.mxu0 0.0
    %138 = vmatprep.subr.mxu0 0.0
    %139 = vmatpush1.msra.mxu0 0.0
    %140 = vmatprep.subr.mxu0 0.0
    %141 = vmatpush1.msra.mxu0 0.0
    %142 = vmatprep.subr.mxu0 0.0
    %143 = vmatpush1.msra.mxu0 0.0
    %144 = vmatprep.subr.mxu0 0.0
    %145 = vmatpush1.msra.mxu0 0.0
    %146 = vmatprep.subr.mxu0 0.0
    %147 = vmatpush1.msra.mxu0 0.0
    %148 = vmatprep.subr.mxu0 0.0
    %149 = vmatpush1.msra.mxu0 0.0
    %150 = vmatprep.subr.mxu0 0.0
    %151 = vmatpush1.msra.mxu0 0.0
    %152 = vmatprep.subr.mxu0 0.0
    %153 = vmatpush1.msra.mxu0 0.0
    %154 = vmatprep.subr.mxu0 0.0
    %155 = vmatpush1.msra.mxu0 0.0
    %156 = vmatprep.subr.mxu0 0.0
    %157 = vmatpush1.msra.mxu0 0.0
    %158 = vmatprep.subr.mxu0 0.0
    %159 = vmatpush1.msra.mxu0 0.0
    %160 = vmatprep.mubr.f32.mxu0 0.0
    %161 = vmatmul.mubr.f32.gmra.mrb[0].mxu0 %v94
    %v162 = vpop.f32.mrb[0].mxu0
    %v163 = vadd.f32 %v90, %v162
    %v164 = vpop.f32.mrb[0].mxu0
    %165 = vdwg.mxu0
    %166 = vst [vmem:[%s5] sm:$0xff] %v163
    // Predicated region
    $region26: #{actor_critic_forward.1} parent=1 // pred_check
      _
    $region27: #{actor_critic_forward.1} parent=1 // pred_check_branch
      %168 = sbr.rel (0) target = $region29
    $region28: #{actor_critic_forward.1} parent=1 // pred_region
      _
    $region29: #{actor_critic_forward.1} parent=1 // pred_fallthru
      _
    // Predicated region
    $region30: #{actor_critic_forward.1} parent=1 // pred_check
      _
    $region31: #{actor_critic_forward.1} parent=1 // pred_check_branch
      %170 = sbr.rel (0) target = $region33
    $region32: #{actor_critic_forward.1} parent=1 // pred_region
      _
    $region33: #{actor_critic_forward.1} parent=1 // pred_fallthru
      _
    %171 = vsyncpa [#allocation3], 1

</llo_original>
